<compile_context>
chip_gen: v6e
topology: v6e:2x2x1
jax: 0.10.0
libtpu: 0.0.40
codegen_flags: <defaults>
</compile_context>

<pallas_src>
import jax
import jax.numpy as jnp
from jax.experimental import pallas as pl
from jax.experimental.pallas import tpu as pltpu

LN_EPS = 1e-5


def _round_up(v, m):
    return (v + m - 1) // m * m


def _tpu_vmem_budgets():
    """Returns (per-step stream-tile byte budget, scoped vmem_limit_bytes)."""
    vmem_phys = 64 * 1024 * 1024          # conservative default (v7x per-TC)
    try:
        info = pltpu.get_tpu_info()
        cap = getattr(info, "vmem_capacity_bytes", None)
        if cap:
            vmem_phys = int(cap)
    except Exception:
        pass
    if vmem_phys >= 96 * 1024 * 1024:     # v5e / v6e: 128 MiB physical VMEM
        return 20 * 1024 * 1024, 96 * 1024 * 1024
    # v7x: 64 MiB physical -> 2-3 stream buffers + residents must stay <= ~40 MiB
    return 10 * 1024 * 1024, 40 * 1024 * 1024


def _choose_seq_tile(seq_len, per_row_bytes, budget_bytes):
    """Pick (seq_tile, padded_seq_len).

    Prefers an exact divisor of seq_len; if no divisor keeps the per-step DMA
    reasonably large, pads seq_len instead (padded x rows meet zero w1 rows,
    so they contribute exactly 0)."""
    max_rows = max(1, budget_bytes // max(per_row_bytes, 1))
    max_rows = min(max_rows, seq_len, 512)
    if seq_len <= max_rows:
        return seq_len, seq_len
    best_div = 1
    for t in range(int(max_rows), 0, -1):
        if seq_len % t == 0:
            best_div = t
            break
    if best_div * 4 >= max_rows * 3:      # divisor keeps >= 75% of the budget
        return best_div, seq_len
    tile = int(max_rows)
    return tile, _round_up(seq_len, tile)


# --------------------------------------------------------------------------
# Kernel 1: LayerNorm + streamed first Linear (the HBM-roofline part).
# grid = (n_h1_splits [parallel], K steps over seq rows [arbitrary]).
# --------------------------------------------------------------------------
def _first_layer_kernel(x_ref,      # (seq_tile, B_pad, D)   streamed
                        gamma_ref,  # (1, D)                 resident
                        beta_ref,   # (1, D)                 resident
                        w1_ref,     # (seq_tile, D, H1_tile) streamed (bf16)
                        b1_ref,     # (1, H1_tile)           resident
                        h1_ref,     # (B_pad, H1_tile) f32 output (post-ReLU)
                        acc_ref):   # (B_pad, H1_tile) f32 scratch
    k = pl.program_id(1)

    @pl.when(k == 0)
    def _init():
        acc_ref[...] = jnp.zeros_like(acc_ref)

    gamma = gamma_ref[...].astype(jnp.float32)          # (1, D)
    beta = beta_ref[...].astype(jnp.float32)
    seq_tile = x_ref.shape[0]
    w_dtype = w1_ref.dtype

    def body(s, carry):
        xs = x_ref[s].astype(jnp.float32)               # (B_pad, D)
        mean = jnp.mean(xs, axis=-1, keepdims=True)
        var = jnp.mean((xs - mean) * (xs - mean), axis=-1, keepdims=True)
        xn = (xs - mean) * jax.lax.rsqrt(var + LN_EPS)
        xn = xn * gamma + beta
        # MXU dot straight into the f32 accumulator (no (ts,B,H1) intermediate).
        acc_ref[...] += jnp.dot(xn.astype(w_dtype), w1_ref[s],
                                preferred_element_type=jnp.float32)
        return carry

    unroll = True if seq_tile <= 64 else 16
    jax.lax.fori_loop(0, seq_tile, body, 0, unroll=unroll)

    @pl.when(k == pl.num_programs(1) - 1)
    def _finalize():
        h1_ref[...] = jnp.maximum(
            acc_ref[...] + b1_ref[...].astype(jnp.float32), 0.0)


# --------------------------------------------------------------------------
# Kernel 2: tiny resident tail 512 -> 256 -> 128 -> C (f32 logits).
# --------------------------------------------------------------------------
def _tail_kernel(h_ref, w2_ref, b2_ref, w3_ref, b3_ref, w4_ref, b4_ref, o_ref):
    h = h_ref[...].astype(jnp.float32)
    h = jnp.maximum(
        jnp.dot(h, w2_ref[...].astype(jnp.float32),
                preferred_element_type=jnp.float32)
        + b2_ref[...].astype(jnp.float32), 0.0)
    h = jnp.maximum(
        jnp.dot(h, w3_ref[...].astype(jnp.float32),
                preferred_element_type=jnp.float32)
        + b3_ref[...].astype(jnp.float32), 0.0)
    o_ref[...] = (jnp.dot(h, w4_ref[...].astype(jnp.float32),
                          preferred_element_type=jnp.float32)
                  + b4_ref[...].astype(jnp.float32)).astype(o_ref.dtype)


def classification_head(x, params, *, weight_dtype=jnp.bfloat16, seq_tile=None,
                        n_h1_splits=2, extra_buffering=False):
    """x: (B, S, D).  Weights stored as (in_features, out_features) so
    y = x @ W + b (== PyTorch x @ W_pt.T + b).  w1 is streamed in
    `weight_dtype` (bf16 default) with f32 accumulation; logits are f32."""
    B, S, D = x.shape
    w1, w2, w3, w4 = params["w1"], params["w2"], params["w3"], params["w4"]
    H1, H2, H3, C = w1.shape[1], w2.shape[1], w3.shape[1], w4.shape[1]
    assert w1.shape[0] == S * D, (w1.shape, S, D)

    B_pad = _round_up(B, 8)           # sublane-dense batch
    C_pad = _round_up(C, 128)         # lane-dense final store

    # Split the H1 columns across a leading 'parallel' axis (v7x: 2 TCs each
    # stream distinct w1 bytes; single-TC chips just loop over it cheaply).
    nh = n_h1_splits
    if nh < 1 or H1 % nh != 0 or (H1 // nh) % 128 != 0:
        nh = 1
    H1t = H1 // nh

    budget_bytes, vmem_limit = _tpu_vmem_budgets()
    x_item = jnp.dtype(x.dtype).itemsize
    w_item = jnp.dtype(weight_dtype).itemsize
    per_row_bytes = D * (H1t * w_item + B_pad * x_item)   # per seq row, per step

    if seq_tile is None:
        seq_tile, S_pad = _choose_seq_tile(S, per_row_bytes, budget_bytes)
    else:
        seq_tile = min(int(seq_tile), S)
        S_pad = _round_up(S, seq_tile)
    n_k = S_pad // seq_tile

    # ---- host-side layout prep (cheap XLA ops) ----
    w1s = w1.astype(weight_dtype)
    x_t = jnp.transpose(x, (1, 0, 2))                     # (S, B, D)
    pad_b, pad_s = B_pad - B, S_pad - S
    if pad_b or pad_s:
        x_t = jnp.pad(x_t, ((0, pad_s), (0, pad_b), (0, 0)))
    w1r = w1s.reshape(S, D, H1)                           # flatten order (s, d)
    if pad_s:
        w1r = jnp.pad(w1r, ((0, pad_s), (0, 0), (0, 0)))  # zero rows -> zero contrib

    w4p, b4v = w4, params["b4"]
    if C_pad != C:
        w4p = jnp.pad(w4p, ((0, 0), (0, C_pad - C)))
        b4v = jnp.pad(b4v, ((0, C_pad - C),))

    gamma = params["gamma"].reshape(1, D)
    beta = params["beta"].reshape(1, D)
    b1 = params["b1"].reshape(1, H1)
    b2 = params["b2"].reshape(1, H2)
    b3 = params["b3"].reshape(1, H3)
    b4 = b4v.reshape(1, C_pad)

    # ---- cost estimate (advisory) ----
    flops = (2 * B_pad * (S_pad * D * H1 + H1 * H2 + H2 * H3 + H3 * C_pad)
             + nh * S_pad * B_pad * 8 * D)
    bytes_accessed = (nh * S_pad * B_pad * D * x_item          # x re-read per split
                      + S_pad * D * H1 * w_item                # w1 stream (dominant)
                      + (H1 * H2 + H2 * H3 + H3 * C_pad) * 4
                      + (H1 + H2 + H3 + C_pad + 2 * D) * 4
                      + B_pad * (H1 + C_pad) * 4)
    cost = pl.CostEstimate(flops=int(flops),
                           transcendentals=int(nh * S_pad * B_pad),
                           bytes_accessed=int(bytes_accessed))

    stream_kw = dict(pipeline_mode=pl.Buffered(3)) if extra_buffering else {}
    in_specs = [
        pl.BlockSpec((seq_tile, B_pad, D), lambda h, k: (k, 0, 0), **stream_kw),
        pl.BlockSpec((1, D), lambda h, k: (0, 0)),
        pl.BlockSpec((1, D), lambda h, k: (0, 0)),
        pl.BlockSpec((seq_tile, D, H1t), lambda h, k: (k, 0, h), **stream_kw),
        pl.BlockSpec((1, H1t), lambda h, k: (0, h)),
    ]

    h1_act = pl.pallas_call(
        _first_layer_kernel,
        out_shape=jax.ShapeDtypeStruct((B_pad, H1), jnp.float32),
        grid_spec=pltpu.PrefetchScalarGridSpec(
            num_scalar_prefetch=0,
            grid=(nh, n_k),
            in_specs=in_specs,
            out_specs=pl.BlockSpec((B_pad, H1t), lambda h, k: (0, h)),
            scratch_shapes=[pltpu.VMEM((B_pad, H1t), jnp.float32)],
        ),
        compiler_params=pltpu.CompilerParams(
            dimension_semantics=("parallel", "arbitrary"),
            vmem_limit_bytes=vmem_limit,
        ),
        cost_estimate=cost,
    )(x_t, gamma, beta, w1r, b1)

    logits_pad = pl.pallas_call(
        _tail_kernel,
        out_shape=jax.ShapeDtypeStruct((B_pad, C_pad), jnp.float32),
        grid_spec=pltpu.PrefetchScalarGridSpec(
            num_scalar_prefetch=0,
            grid=(1,),
            in_specs=[
                pl.BlockSpec((B_pad, H1), lambda i: (0, 0)),
                pl.BlockSpec((H1, H2), lambda i: (0, 0)),
                pl.BlockSpec((1, H2), lambda i: (0, 0)),
                pl.BlockSpec((H2, H3), lambda i: (0, 0)),
                pl.BlockSpec((1, H3), lambda i: (0, 0)),
                pl.BlockSpec((H3, C_pad), lambda i: (0, 0)),
                pl.BlockSpec((1, C_pad), lambda i: (0, 0)),
            ],
            out_specs=pl.BlockSpec((B_pad, C_pad), lambda i: (0, 0)),
        ),
        compiler_params=pltpu.CompilerParams(
            dimension_semantics=("arbitrary",)),
    )(h1_act, w2, b2, w3, b3, w4p, b4)

    return logits_pad[:B, :C]


def init_params(key, d_model, seq_len, n_classes=5):
    """Deterministic synthetic params (shapes match the PyTorch module)."""
    keys = jax.random.split(key, 10)
    f_in = d_model * seq_len

    def lin(kw, kb, fan_in, fan_out):
        bound = 1.0 / jnp.sqrt(fan_in)
        w = jax.random.uniform(kw, (fan_in, fan_out), jnp.float32, -bound, bound)
        b = jax.random.uniform(kb, (fan_out,), jnp.float32, -bound, bound)
        return w, b

    w1, b1 = lin(keys[0], keys[1], f_in, 512)
    w2, b2 = lin(keys[2], keys[3], 512, 256)
    w3, b3 = lin(keys[4], keys[5], 256, 128)
    w4, b4 = lin(keys[6], keys[7], 128, n_classes)
    gamma = 1.0 + 0.1 * jax.random.normal(keys[8], (d_model,), jnp.float32)
    beta = 0.1 * jax.random.normal(keys[9], (d_model,), jnp.float32)
    return dict(gamma=gamma, beta=beta,
                w1=w1, b1=b1, w2=w2, b2=b2, w3=w3, b3=b3, w4=w4, b4=b4)


def reference_head(x, p, first_layer_dtype=jnp.float32):
    """Pure-JAX reference. first_layer_dtype mirrors the kernel's streamed dtype."""
    mean = jnp.mean(x, axis=-1, keepdims=True)
    var = jnp.mean((x - mean) ** 2, axis=-1, keepdims=True)
    xn = (x - mean) / jnp.sqrt(var + LN_EPS) * p["gamma"] + p["beta"]
    flat = xn.reshape(x.shape[0], -1)
    h = jnp.dot(flat.astype(first_layer_dtype), p["w1"].astype(first_layer_dtype),
                preferred_element_type=jnp.float32)
    h = jnp.maximum(h + p["b1"], 0.0)
    h = jnp.maximum(h @ p["w2"] + p["b2"], 0.0)
    h = jnp.maximum(h @ p["w3"] + p["b3"], 0.0)
    return h @ p["w4"] + p["b4"]


if __name__ == "__main__":
    key = jax.random.PRNGKey(0)
    k_x, k_p = jax.random.split(key)

    B, S, D, C = 2, 16, 32, 5
    x = jax.random.normal(k_x, (B, S, D), jnp.float32)
    params = init_params(k_p, d_model=D, seq_len=S, n_classes=C)
    ref_f32 = reference_head(x, params)

    # 1) f32 weight stream, seq_tile=4 -> grid (2, 4): validates kernel math.
    out_f32 = jax.block_until_ready(
        classification_head(x, params, weight_dtype=jnp.float32, seq_tile=4))
    assert out_f32.shape == (B, C), out_f32.shape
    assert jnp.allclose(out_f32, ref_f32, atol=2e-3, rtol=2e-3)

    # 2) Default bf16-streamed w1 (the perf path).
    out_bf16 = jax.block_until_ready(classification_head(x, params, seq_tile=4))
    ref_bf16 = reference_head(x, params, first_layer_dtype=jnp.bfloat16)
    assert out_bf16.shape == (B, C)
    assert jnp.allclose(out_bf16, ref_bf16, atol=2e-3, rtol=2e-3)
    assert jnp.allclose(out_bf16, ref_f32, atol=5e-2, rtol=5e-2)

    # 3) Non-divisor seq_tile -> exercises the zero-padded seq path (S 16 -> 18).
    out_pad = jax.block_until_ready(classification_head(x, params, seq_tile=6))
    assert jnp.allclose(out_pad, ref_bf16, atol=2e-3, rtol=2e-3)

    print("KERNEL_OK")
</pallas_src>

<mosaic_0001>
module attributes {stable_mosaic.version = 11 : i64} {
  func.func @_first_layer_kernel(%arg0: i32, %arg1: i32, %arg2: memref<4x8x32xf32, #tpu.memory_space<vmem>>, %arg3: memref<1x32xf32, #tpu.memory_space<vmem>>, %arg4: memref<1x32xf32, #tpu.memory_space<vmem>>, %arg5: memref<4x32x256xf32, #tpu.memory_space<vmem>>, %arg6: memref<1x256xf32, #tpu.memory_space<vmem>>, %arg7: memref<8x256xf32, #tpu.memory_space<vmem>>, %arg8: memref<8x256xf32, #tpu.memory_space<vmem>>) attributes {dimension_semantics = [#tpu.dimension_semantics<parallel>, #tpu.dimension_semantics<arbitrary>], iteration_bounds = array<i64: 2, 4>, scalar_prefetch = 0 : i64, scratch_operands = 1 : i64, tpu.core_type = #tpu.core_type<tc>, window_params = [{transform_indices = @transform_0, window_bounds = array<i64: 4, 8, 32>}, {pipeline_mode = #tpu.pipeline_mode<synchronous>, transform_indices = @transform_1, window_bounds = array<i64: 1, 32>}, {pipeline_mode = #tpu.pipeline_mode<synchronous>, transform_indices = @transform_2, window_bounds = array<i64: 1, 32>}, {transform_indices = @transform_3, window_bounds = array<i64: 4, 32, 256>}, {transform_indices = @transform_4, window_bounds = array<i64: 1, 256>}, {transform_indices = @transform_5, window_bounds = array<i64: 8, 256>}]} {
    %c0_i32 = arith.constant 0 : i32
    %0 = arith.cmpi eq, %arg1, %c0_i32 : i32
    %1 = arith.extui %0 : i1 to i32
    %c0_i32_0 = arith.constant 0 : i32
    %2 = arith.cmpi ne, %1, %c0_i32_0 : i32
    scf.if %2 {
      %cst_62 = arith.constant 0.000000e+00 : f32
      %144 = vector.broadcast %cst_62 : f32 to vector<8x256xf32>
      %c0_63 = arith.constant 0 : index
      %c0_64 = arith.constant 0 : index
      %145 = vector.load %arg8[%c0_63, %c0_64] : memref<8x256xf32, #tpu.memory_space<vmem>>, vector<8x256xf32>
      tpu.vector_store %arg8[%c0_63, %c0_64], %144 {strides = array<i32>} : memref<8x256xf32, #tpu.memory_space<vmem>>, vector<8x256xf32>,
    } else {
    }
    %c0 = arith.constant 0 : index
    %c0_1 = arith.constant 0 : index
    %3 = vector.load %arg3[%c0, %c0_1] : memref<1x32xf32, #tpu.memory_space<vmem>>, vector<1x32xf32>
    %c0_2 = arith.constant 0 : index
    %c0_3 = arith.constant 0 : index
    %4 = vector.load %arg4[%c0_2, %c0_3] : memref<1x32xf32, #tpu.memory_space<vmem>>, vector<1x32xf32>
    %c0_i32_4 = arith.constant 0 : i32
    %5 = arith.index_cast %c0_i32_4 : i32 to index
    %c0_5 = arith.constant 0 : index
    %c0_6 = arith.constant 0 : index
    %6 = vector.load %arg2[%5, %c0_5, %c0_6] : memref<4x8x32xf32, #tpu.memory_space<vmem>>, vector<1x8x32xf32>
    %7 = vector.shape_cast %6 : vector<1x8x32xf32> to vector<8x32xf32>
    %cst = arith.constant dense<0.000000e+00> : vector<8xf32>
    %8 = vector.multi_reduction <add>, %7, %cst [1] : vector<8x32xf32> to vector<8xf32>
    %9 = vector.shape_cast %8 : vector<8xf32> to vector<8x1xf32>
    %cst_7 = arith.constant 3.200000e+01 : f32
    %10 = vector.broadcast %cst_7 : f32 to vector<8x1xf32>
    %11 = arith.divf %9, %10 : vector<8x1xf32>
    %12 = vector.broadcast %11 : vector<8x1xf32> to vector<8x32xf32>
    %13 = arith.subf %7, %12 : vector<8x32xf32>
    %14 = vector.broadcast %11 : vector<8x1xf32> to vector<8x32xf32>
    %15 = arith.subf %7, %14 : vector<8x32xf32>
    %16 = arith.mulf %13, %15 : vector<8x32xf32>
    %cst_8 = arith.constant dense<0.000000e+00> : vector<8xf32>
    %17 = vector.multi_reduction <add>, %16, %cst_8 [1] : vector<8x32xf32> to vector<8xf32>
    %18 = vector.shape_cast %17 : vector<8xf32> to vector<8x1xf32>
    %cst_9 = arith.constant 3.200000e+01 : f32
    %19 = vector.broadcast %cst_9 : f32 to vector<8x1xf32>
    %20 = arith.divf %18, %19 : vector<8x1xf32>
    %21 = vector.broadcast %11 : vector<8x1xf32> to vector<8x32xf32>
    %22 = arith.subf %7, %21 : vector<8x32xf32>
    %cst_10 = arith.constant 9.99999974E-6 : f32
    %23 = vector.broadcast %cst_10 : f32 to vector<8x1xf32>
    %24 = arith.addf %20, %23 : vector<8x1xf32>
    %25 = math.rsqrt %24 : vector<8x1xf32>
    %26 = vector.broadcast %25 : vector<8x1xf32> to vector<8x32xf32>
    %27 = arith.mulf %22, %26 : vector<8x32xf32>
    %28 = vector.broadcast %3 : vector<1x32xf32> to vector<8x32xf32>
    %29 = arith.mulf %27, %28 : vector<8x32xf32>
    %30 = vector.broadcast %4 : vector<1x32xf32> to vector<8x32xf32>
    %31 = arith.addf %29, %30 : vector<8x32xf32>
    %c0_11 = arith.constant 0 : index
    %c0_12 = arith.constant 0 : index
    %32 = vector.load %arg8[%c0_11, %c0_12] : memref<8x256xf32, #tpu.memory_space<vmem>>, vector<8x256xf32>
    %33 = arith.index_cast %c0_i32_4 : i32 to index
    %c0_13 = arith.constant 0 : index
    %c0_14 = arith.constant 0 : index
    %34 = vector.load %arg5[%33, %c0_13, %c0_14] : memref<4x32x256xf32, #tpu.memory_space<vmem>>, vector<1x32x256xf32>
    %35 = vector.shape_cast %34 : vector<1x32x256xf32> to vector<32x256xf32>
    %cst_15 = arith.constant dense<0.000000e+00> : vector<8x256xf32>
    %36 = tpu.matmul %31, %35, %cst_15 {dimension_numbers = #tpu.dot_dimension_numbers<[1], [0], [0], [1], [0, 0, 1, 1], [], []>} : vector<8x32xf32>, vector<32x256xf32>, vector<8x256xf32> -> vector<8x256xf32>
    %37 = arith.addf %32, %36 : vector<8x256xf32>
    %c0_16 = arith.constant 0 : index
    %c0_17 = arith.constant 0 : index
    %38 = vector.load %arg8[%c0_16, %c0_17] : memref<8x256xf32, #tpu.memory_space<vmem>>, vector<8x256xf32>
    tpu.vector_store %arg8[%c0_16, %c0_17], %37 {strides = array<i32>} : memref<8x256xf32, #tpu.memory_space<vmem>>, vector<8x256xf32>,
    %c1_i32 = arith.constant 1 : i32
    %39 = arith.index_cast %c1_i32 : i32 to index
    %c0_18 = arith.constant 0 : index
    %c0_19 = arith.constant 0 : index
    %40 = vector.load %arg2[%39, %c0_18, %c0_19] : memref<4x8x32xf32, #tpu.memory_space<vmem>>, vector<1x8x32xf32>
    %41 = vector.shape_cast %40 : vector<1x8x32xf32> to vector<8x32xf32>
    %cst_20 = arith.constant dense<0.000000e+00> : vector<8xf32>
    %42 = vector.multi_reduction <add>, %41, %cst_20 [1] : vector<8x32xf32> to vector<8xf32>
    %43 = vector.shape_cast %42 : vector<8xf32> to vector<8x1xf32>
    %cst_21 = arith.constant 3.200000e+01 : f32
    %44 = vector.broadcast %cst_21 : f32 to vector<8x1xf32>
    %45 = arith.divf %43, %44 : vector<8x1xf32>
    %46 = vector.broadcast %45 : vector<8x1xf32> to vector<8x32xf32>
    %47 = arith.subf %41, %46 : vector<8x32xf32>
    %48 = vector.broadcast %45 : vector<8x1xf32> to vector<8x32xf32>
    %49 = arith.subf %41, %48 : vector<8x32xf32>
    %50 = arith.mulf %47, %49 : vector<8x32xf32>
    %cst_22 = arith.constant dense<0.000000e+00> : vector<8xf32>
    %51 = vector.multi_reduction <add>, %50, %cst_22 [1] : vector<8x32xf32> to vector<8xf32>
    %52 = vector.shape_cast %51 : vector<8xf32> to vector<8x1xf32>
    %cst_23 = arith.constant 3.200000e+01 : f32
    %53 = vector.broadcast %cst_23 : f32 to vector<8x1xf32>
    %54 = arith.divf %52, %53 : vector<8x1xf32>
    %55 = vector.broadcast %45 : vector<8x1xf32> to vector<8x32xf32>
    %56 = arith.subf %41, %55 : vector<8x32xf32>
    %cst_24 = arith.constant 9.99999974E-6 : f32
    %57 = vector.broadcast %cst_24 : f32 to vector<8x1xf32>
    %58 = arith.addf %54, %57 : vector<8x1xf32>
    %59 = math.rsqrt %58 : vector<8x1xf32>
    %60 = vector.broadcast %59 : vector<8x1xf32> to vector<8x32xf32>
    %61 = arith.mulf %56, %60 : vector<8x32xf32>
    %62 = vector.broadcast %3 : vector<1x32xf32> to vector<8x32xf32>
    %63 = arith.mulf %61, %62 : vector<8x32xf32>
    %64 = vector.broadcast %4 : vector<1x32xf32> to vector<8x32xf32>
    %65 = arith.addf %63, %64 : vector<8x32xf32>
    %c0_25 = arith.constant 0 : index
    %c0_26 = arith.constant 0 : index
    %66 = vector.load %arg8[%c0_25, %c0_26] : memref<8x256xf32, #tpu.memory_space<vmem>>, vector<8x256xf32>
    %67 = arith.index_cast %c1_i32 : i32 to index
    %c0_27 = arith.constant 0 : index
    %c0_28 = arith.constant 0 : index
    %68 = vector.load %arg5[%67, %c0_27, %c0_28] : memref<4x32x256xf32, #tpu.memory_space<vmem>>, vector<1x32x256xf32>
    %69 = vector.shape_cast %68 : vector<1x32x256xf32> to vector<32x256xf32>
    %cst_29 = arith.constant dense<0.000000e+00> : vector<8x256xf32>
    %70 = tpu.matmul %65, %69, %cst_29 {dimension_numbers = #tpu.dot_dimension_numbers<[1], [0], [0], [1], [0, 0, 1, 1], [], []>} : vector<8x32xf32>, vector<32x256xf32>, vector<8x256xf32> -> vector<8x256xf32>
    %71 = arith.addf %66, %70 : vector<8x256xf32>
    %c0_30 = arith.constant 0 : index
    %c0_31 = arith.constant 0 : index
    %72 = vector.load %arg8[%c0_30, %c0_31] : memref<8x256xf32, #tpu.memory_space<vmem>>, vector<8x256xf32>
    tpu.vector_store %arg8[%c0_30, %c0_31], %71 {strides = array<i32>} : memref<8x256xf32, #tpu.memory_space<vmem>>, vector<8x256xf32>,
    %c2_i32 = arith.constant 2 : i32
    %73 = arith.index_cast %c2_i32 : i32 to index
    %c0_32 = arith.constant 0 : index
    %c0_33 = arith.constant 0 : index
    %74 = vector.load %arg2[%73, %c0_32, %c0_33] : memref<4x8x32xf32, #tpu.memory_space<vmem>>, vector<1x8x32xf32>
    %75 = vector.shape_cast %74 : vector<1x8x32xf32> to vector<8x32xf32>
    %cst_34 = arith.constant dense<0.000000e+00> : vector<8xf32>
    %76 = vector.multi_reduction <add>, %75, %cst_34 [1] : vector<8x32xf32> to vector<8xf32>
    %77 = vector.shape_cast %76 : vector<8xf32> to vector<8x1xf32>
    %cst_35 = arith.constant 3.200000e+01 : f32
    %78 = vector.broadcast %cst_35 : f32 to vector<8x1xf32>
    %79 = arith.divf %77, %78 : vector<8x1xf32>
    %80 = vector.broadcast %79 : vector<8x1xf32> to vector<8x32xf32>
    %81 = arith.subf %75, %80 : vector<8x32xf32>
    %82 = vector.broadcast %79 : vector<8x1xf32> to vector<8x32xf32>
    %83 = arith.subf %75, %82 : vector<8x32xf32>
    %84 = arith.mulf %81, %83 : vector<8x32xf32>
    %cst_36 = arith.constant dense<0.000000e+00> : vector<8xf32>
    %85 = vector.multi_reduction <add>, %84, %cst_36 [1] : vector<8x32xf32> to vector<8xf32>
    %86 = vector.shape_cast %85 : vector<8xf32> to vector<8x1xf32>
    %cst_37 = arith.constant 3.200000e+01 : f32
    %87 = vector.broadcast %cst_37 : f32 to vector<8x1xf32>
    %88 = arith.divf %86, %87 : vector<8x1xf32>
    %89 = vector.broadcast %79 : vector<8x1xf32> to vector<8x32xf32>
    %90 = arith.subf %75, %89 : vector<8x32xf32>
    %cst_38 = arith.constant 9.99999974E-6 : f32
    %91 = vector.broadcast %cst_38 : f32 to vector<8x1xf32>
    %92 = arith.addf %88, %91 : vector<8x1xf32>
    %93 = math.rsqrt %92 : vector<8x1xf32>
    %94 = vector.broadcast %93 : vector<8x1xf32> to vector<8x32xf32>
    %95 = arith.mulf %90, %94 : vector<8x32xf32>
    %96 = vector.broadcast %3 : vector<1x32xf32> to vector<8x32xf32>
    %97 = arith.mulf %95, %96 : vector<8x32xf32>
    %98 = vector.broadcast %4 : vector<1x32xf32> to vector<8x32xf32>
    %99 = arith.addf %97, %98 : vector<8x32xf32>
    %c0_39 = arith.constant 0 : index
    %c0_40 = arith.constant 0 : index
    %100 = vector.load %arg8[%c0_39, %c0_40] : memref<8x256xf32, #tpu.memory_space<vmem>>, vector<8x256xf32>
    %101 = arith.index_cast %c2_i32 : i32 to index
    %c0_41 = arith.constant 0 : index
    %c0_42 = arith.constant 0 : index
    %102 = vector.load %arg5[%101, %c0_41, %c0_42] : memref<4x32x256xf32, #tpu.memory_space<vmem>>, vector<1x32x256xf32>
    %103 = vector.shape_cast %102 : vector<1x32x256xf32> to vector<32x256xf32>
    %cst_43 = arith.constant dense<0.000000e+00> : vector<8x256xf32>
    %104 = tpu.matmul %99, %103, %cst_43 {dimension_numbers = #tpu.dot_dimension_numbers<[1], [0], [0], [1], [0, 0, 1, 1], [], []>} : vector<8x32xf32>, vector<32x256xf32>, vector<8x256xf32> -> vector<8x256xf32>
    %105 = arith.addf %100, %104 : vector<8x256xf32>
    %c0_44 = arith.constant 0 : index
    %c0_45 = arith.constant 0 : index
    %106 = vector.load %arg8[%c0_44, %c0_45] : memref<8x256xf32, #tpu.memory_space<vmem>>, vector<8x256xf32>
    tpu.vector_store %arg8[%c0_44, %c0_45], %105 {strides = array<i32>} : memref<8x256xf32, #tpu.memory_space<vmem>>, vector<8x256xf32>,
    %c3_i32 = arith.constant 3 : i32
    %107 = arith.index_cast %c3_i32 : i32 to index
    %c0_46 = arith.constant 0 : index
    %c0_47 = arith.constant 0 : index
    %108 = vector.load %arg2[%107, %c0_46, %c0_47] : memref<4x8x32xf32, #tpu.memory_space<vmem>>, vector<1x8x32xf32>
    %109 = vector.shape_cast %108 : vector<1x8x32xf32> to vector<8x32xf32>
    %cst_48 = arith.constant dense<0.000000e+00> : vector<8xf32>
    %110 = vector.multi_reduction <add>, %109, %cst_48 [1] : vector<8x32xf32> to vector<8xf32>
    %111 = vector.shape_cast %110 : vector<8xf32> to vector<8x1xf32>
    %cst_49 = arith.constant 3.200000e+01 : f32
    %112 = vector.broadcast %cst_49 : f32 to vector<8x1xf32>
    %113 = arith.divf %111, %112 : vector<8x1xf32>
    %114 = vector.broadcast %113 : vector<8x1xf32> to vector<8x32xf32>
    %115 = arith.subf %109, %114 : vector<8x32xf32>
    %116 = vector.broadcast %113 : vector<8x1xf32> to vector<8x32xf32>
    %117 = arith.subf %109, %116 : vector<8x32xf32>
    %118 = arith.mulf %115, %117 : vector<8x32xf32>
    %cst_50 = arith.constant dense<0.000000e+00> : vector<8xf32>
    %119 = vector.multi_reduction <add>, %118, %cst_50 [1] : vector<8x32xf32> to vector<8xf32>
    %120 = vector.shape_cast %119 : vector<8xf32> to vector<8x1xf32>
    %cst_51 = arith.constant 3.200000e+01 : f32
    %121 = vector.broadcast %cst_51 : f32 to vector<8x1xf32>
    %122 = arith.divf %120, %121 : vector<8x1xf32>
    %123 = vector.broadcast %113 : vector<8x1xf32> to vector<8x32xf32>
    %124 = arith.subf %109, %123 : vector<8x32xf32>
    %cst_52 = arith.constant 9.99999974E-6 : f32
    %125 = vector.broadcast %cst_52 : f32 to vector<8x1xf32>
    %126 = arith.addf %122, %125 : vector<8x1xf32>
    %127 = math.rsqrt %126 : vector<8x1xf32>
    %128 = vector.broadcast %127 : vector<8x1xf32> to vector<8x32xf32>
    %129 = arith.mulf %124, %128 : vector<8x32xf32>
    %130 = vector.broadcast %3 : vector<1x32xf32> to vector<8x32xf32>
    %131 = arith.mulf %129, %130 : vector<8x32xf32>
    %132 = vector.broadcast %4 : vector<1x32xf32> to vector<8x32xf32>
    %133 = arith.addf %131, %132 : vector<8x32xf32>
    %c0_53 = arith.constant 0 : index
    %c0_54 = arith.constant 0 : index
    %134 = vector.load %arg8[%c0_53, %c0_54] : memref<8x256xf32, #tpu.memory_space<vmem>>, vector<8x256xf32>
    %135 = arith.index_cast %c3_i32 : i32 to index
    %c0_55 = arith.constant 0 : index
    %c0_56 = arith.constant 0 : index
    %136 = vector.load %arg5[%135, %c0_55, %c0_56] : memref<4x32x256xf32, #tpu.memory_space<vmem>>, vector<1x32x256xf32>
    %137 = vector.shape_cast %136 : vector<1x32x256xf32> to vector<32x256xf32>
    %cst_57 = arith.constant dense<0.000000e+00> : vector<8x256xf32>
    %138 = tpu.matmul %133, %137, %cst_57 {dimension_numbers = #tpu.dot_dimension_numbers<[1], [0], [0], [1], [0, 0, 1, 1], [], []>} : vector<8x32xf32>, vector<32x256xf32>, vector<8x256xf32> -> vector<8x256xf32>
    %139 = arith.addf %134, %138 : vector<8x256xf32>
    %c0_58 = arith.constant 0 : index
    %c0_59 = arith.constant 0 : index
    %140 = vector.load %arg8[%c0_58, %c0_59] : memref<8x256xf32, #tpu.memory_space<vmem>>, vector<8x256xf32>
    tpu.vector_store %arg8[%c0_58, %c0_59], %139 {strides = array<i32>} : memref<8x256xf32, #tpu.memory_space<vmem>>, vector<8x256xf32>,
    %c4_i32 = arith.constant 4 : i32
    %c3_i32_60 = arith.constant 3 : i32
    %141 = arith.cmpi eq, %arg1, %c3_i32_60 : i32
    %142 = arith.extui %141 : i1 to i32
    %c0_i32_61 = arith.constant 0 : i32
    %143 = arith.cmpi ne, %142, %c0_i32_61 : i32
    scf.if %143 {
      %c0_62 = arith.constant 0 : index
      %c0_63 = arith.constant 0 : index
      %144 = vector.load %arg8[%c0_62, %c0_63] : memref<8x256xf32, #tpu.memory_space<vmem>>, vector<8x256xf32>
      %c0_64 = arith.constant 0 : index
      %c0_65 = arith.constant 0 : index
      %145 = vector.load %arg6[%c0_64, %c0_65] : memref<1x256xf32, #tpu.memory_space<vmem>>, vector<1x256xf32>
      %146 = vector.broadcast %145 : vector<1x256xf32> to vector<8x256xf32>
      %147 = arith.addf %144, %146 : vector<8x256xf32>
      %cst_66 = arith.constant 0.000000e+00 : f32
      %148 = vector.broadcast %cst_66 : f32 to vector<8x256xf32>
      %149 = arith.maximumf %147, %148 : vector<8x256xf32>
      %c0_67 = arith.constant 0 : index
      %c0_68 = arith.constant 0 : index
      %150 = vector.load %arg7[%c0_67, %c0_68] : memref<8x256xf32, #tpu.memory_space<vmem>>, vector<8x256xf32>
      tpu.vector_store %arg7[%c0_67, %c0_68], %149 {strides = array<i32>} : memref<8x256xf32, #tpu.memory_space<vmem>>, vector<8x256xf32>,
    } else {
    }
    return
  }
  func.func @transform_0(%arg0: i32, %arg1: i32) -> (i32, i32, i32) {
    %c0_i32 = arith.constant 0 : i32
    %c0_i32_0 = arith.constant 0 : i32
    %c0_i32_1 = arith.constant 0 : i32
    return %arg1, %c0_i32, %c0_i32_0 : i32, i32, i32
  }
  func.func @transform_1(%arg0: i32, %arg1: i32) -> (i32, i32) {
    %c0_i32 = arith.constant 0 : i32
    %c0_i32_0 = arith.constant 0 : i32
    %c0_i32_1 = arith.constant 0 : i32
    return %c0_i32, %c0_i32_0 : i32, i32
  }
  func.func @transform_2(%arg0: i32, %arg1: i32) -> (i32, i32) {
    %c0_i32 = arith.constant 0 : i32
    %c0_i32_0 = arith.constant 0 : i32
    %c0_i32_1 = arith.constant 0 : i32
    return %c0_i32, %c0_i32_0 : i32, i32
  }
  func.func @transform_3(%arg0: i32, %arg1: i32) -> (i32, i32, i32) {
    %c0_i32 = arith.constant 0 : i32
    %c0_i32_0 = arith.constant 0 : i32
    return %arg1, %c0_i32, %arg0 : i32, i32, i32
  }
  func.func @transform_4(%arg0: i32, %arg1: i32) -> (i32, i32) {
    %c0_i32 = arith.constant 0 : i32
    %c0_i32_0 = arith.constant 0 : i32
    return %c0_i32, %arg0 : i32, i32
  }
  func.func @transform_5(%arg0: i32, %arg1: i32) -> (i32, i32) {
    %c0_i32 = arith.constant 0 : i32
    %c0_i32_0 = arith.constant 0 : i32
    return %c0_i32, %arg0 : i32, i32
  }
}

</mosaic_0001>

<llo_original>
// kernel: tpu_custom_call.1
$region0: #{tpu_custom_call.1}
  #allocation0 [shape = 'u32[]', space=smem, size = 0x4, offset = 0x4, fixed_abs, tag = 'smem constant byte address 0x4 - core index']
  #allocation1 [shape = 'u32[144,128]{1,0:T(1,128)}', space=vmem, size = 0x12000, scoped, tag = 'internal scratch']
  #allocation2 [shape = 'f32[8,256]{1,0:T(8,128)}', space=vmem, size = 0x2000, scoped, tag = 'scratch operand']
  %s0 = inlined_call_operand.hbm [shape: f32[16,8,32], index: 0, kind: input, shape index: {}]
  %s1 = inlined_call_operand.vmem [shape: f32[1,32], index: 1, kind: input, shape index: {}]
  %s2 = inlined_call_operand.vmem [shape: f32[1,32], index: 2, kind: input, shape index: {}]
  %s3 = inlined_call_operand.hbm [shape: f32[16,32,512], index: 3, kind: input, shape index: {}]
  %s4 = inlined_call_operand.vmem [shape: f32[1,512], index: 4, kind: input, shape index: {}]
  %s5 = inlined_call_operand.hbm [shape: f32[8,512], index: 5, kind: output, shape index: {}]
  %s6 = sld [smem:[#allocation0]]
  $region69: #{tpu_custom_call.1} parent=0
    _
  %s8 = ssub.s32 1, %s6
  %s9 = scalar_select 0, %s8, %s6
  $region1: #{tpu_custom_call.1} parent=0
    #allocation3 [shape = 'u8[32768]{0}', space=vmem, size = 0x8000, scoped, tag = 'input window, operand 0']
    #allocation4 [shape = 's32[2]{0}', space=sflag, size = 0x8, scoped, tag = 'scoped memory for tpu_custom_call.1']
    #allocation5 [shape = 's32[2]{0}', space=sflag, size = 0x8, scoped, tag = 'scoped memory for tpu_custom_call.1']
    #allocation6 [shape = 'u8[262144]{0}', space=vmem, size = 0x40000, scoped, tag = 'input window, operand 3']
    #allocation7 [shape = 's32[2]{0}', space=sflag, size = 0x8, scoped, tag = 'scoped memory for tpu_custom_call.1']
    #allocation8 [shape = 'u8[16384]{0}', space=vmem, size = 0x4000, scoped, tag = 'output window, operand 0']
    %10 = vsyncpa [#allocation4], 0
    %s11 = scalar_lea.sflag [#allocation4], 1
    %12 = vsyncpa %s11, 0
    %13 = vsyncpa [#allocation7], 0
    %s14 = scalar_lea.sflag [#allocation7], 1
    %15 = vsyncpa %s14, 0
    %16 = vsyncpa [#allocation5], 0
    %s17 = scalar_lea.sflag [#allocation5], 1
    %18 = vsyncpa %s17, 0
    loop: start=0, step=1, limit=10
    $region2: #{tpu_custom_call.1} parent=1 // loop_pre_header
      _
    $region3: #{tpu_custom_call.1} parent=1 // loop_header
      %s20 = sphi 0, %s24
      %p21 = scmp.ge.s32.totalorder %s20, 10
      %s27 = sphi 0, %s39
      %s28 = sphi 0, %s35
      %s29 = sphi 0, %s27
      %s30 = sphi 0, %s28
      %s31 = sphi 0, %s29
      %s32 = sphi 0, %s30
      %s42 = sphi 0, %s44
      %s45 = sphi 0, %s42
      %s46 = sphi 0, %s45
      %s62 = sphi 0, %s46
      %s66 = sphi 0, %s66
      %s68 = sphi 0, %s66
      %s69 = sphi 0, %s68
      %s83 = sphi 0, %s69
      %s87 = sphi 0, %s87
      %s89 = sphi 0, %s87
      %s90 = sphi 0, %s89
      %s104 = sphi 0, %s90
      %s112 = sphi 0, %s114
      %s115 = sphi 0, %s112
      %s116 = sphi 0, %s115
      %s132 = sphi 0, %s116
      %s138 = sphi 0, %s140
      %s141 = sphi 0, %s138
      %s142 = sphi 0, %s141
      %s158 = sphi 0, %s142
      %s164 = sphi 0, %s166
      %s167 = sphi 0, %s164
      %s168 = sphi 0, %s167
      %s184 = sphi 0, %s168
    $region4: #{tpu_custom_call.1} parent=1 // loop_header_branch
      %23 = sbr.rel (%p21) target = $region8
    $region5: #{tpu_custom_call.1} parent=1 // loop_body
      %s25 = ssub.s32 %s20, 1
      %s26 = ssub.s32 %s20, 2
      %s33 = sadd.s32 1, %s28
      %p34 = scmp.ge.s32.totalorder %s33, 4
      %s35 = scalar_select %p34, 0, %s33
      %s36 = sadd.s32 1, %s27
      %s37 = scalar_select %p34, %s36, %s27
      %p38 = scmp.ge.s32.totalorder %s37, 2
      %s39 = scalar_select %p38, 0, %s37
      %s40 = ssub.s32 %s28, %s35
      %p41 = scmp.eq.s32.totalorder %s40, 0
      %s43 = sadd.s32 %s42, 1
      %s44 = scalar_select %p41, %s42, %s43
      %p47 = pneg %p41
      %p48 = scmp.eq.s32.totalorder %s20, 7
      %p49 = por %p47, %p48
      %p50 = scmp.ne.s32.totalorder %s42, %s45
      %p51 = scmp.eq.s32.totalorder %s20, 0
      %p52 = por %p50, %p51
      %p53 = scmp.ne.s32.totalorder %s42, %s45
      %p54 = scmp.eq.s32.totalorder %s25, 7
      %p55 = por %p53, %p54
      %p56 = scmp.ne.s32.totalorder %s45, %s46
      %p57 = scmp.eq.s32.totalorder %s25, 0
      %p58 = por %p56, %p57
      %p59 = scmp.ne.s32.totalorder %s45, %s46
      %p60 = scmp.eq.s32.totalorder %s26, 7
      %p61 = por %p59, %p60
      %p63 = scmp.ne.s32.totalorder %s46, %s62
      %p64 = scmp.eq.s32.totalorder %s26, 0
      %p65 = por %p63, %p64
      %s67 = sadd.s32 %s66, 1
      %p70 = scmp.eq.s32.totalorder %s20, 7
      %p71 = scmp.ne.s32.totalorder %s66, %s68
      %p72 = scmp.eq.s32.totalorder %s20, 0
      %p73 = por %p71, %p72
      %p74 = scmp.ne.s32.totalorder %s66, %s68
      %p75 = scmp.eq.s32.totalorder %s25, 7
      %p76 = por %p74, %p75
      %p77 = scmp.ne.s32.totalorder %s68, %s69
      %p78 = scmp.eq.s32.totalorder %s25, 0
      %p79 = por %p77, %p78
      %p80 = scmp.ne.s32.totalorder %s68, %s69
      %p81 = scmp.eq.s32.totalorder %s26, 7
      %p82 = por %p80, %p81
      %p84 = scmp.ne.s32.totalorder %s69, %s83
      %p85 = scmp.eq.s32.totalorder %s26, 0
      %p86 = por %p84, %p85
      %s88 = sadd.s32 %s87, 1
      %p91 = scmp.eq.s32.totalorder %s20, 7
      %p92 = scmp.ne.s32.totalorder %s87, %s89
      %p93 = scmp.eq.s32.totalorder %s20, 0
      %p94 = por %p92, %p93
      %p95 = scmp.ne.s32.totalorder %s87, %s89
      %p96 = scmp.eq.s32.totalorder %s25, 7
      %p97 = por %p95, %p96
      %p98 = scmp.ne.s32.totalorder %s89, %s90
      %p99 = scmp.eq.s32.totalorder %s25, 0
      %p100 = por %p98, %p99
      %p101 = scmp.ne.s32.totalorder %s89, %s90
      %p102 = scmp.eq.s32.totalorder %s26, 7
      %p103 = por %p101, %p102
      %p105 = scmp.ne.s32.totalorder %s90, %s104
      %p106 = scmp.eq.s32.totalorder %s26, 0
      %p107 = por %p105, %p106
      %s108 = ssub.s32 %s28, %s35
      %s109 = ssub.s32 %s27, %s39
      %s110 = sor.u32 %s108, %s109
      %p111 = scmp.eq.s32.totalorder %s110, 0
      %s113 = sadd.s32 %s112, 1
      %s114 = scalar_select %p111, %s112, %s113
      %p117 = pneg %p111
      %p118 = scmp.eq.s32.totalorder %s20, 7
      %p119 = por %p117, %p118
      %p120 = scmp.ne.s32.totalorder %s112, %s115
      %p121 = scmp.eq.s32.totalorder %s20, 0
      %p122 = por %p120, %p121
      %p123 = scmp.ne.s32.totalorder %s112, %s115
      %p124 = scmp.eq.s32.totalorder %s25, 7
      %p125 = por %p123, %p124
      %p126 = scmp.ne.s32.totalorder %s115, %s116
      %p127 = scmp.eq.s32.totalorder %s25, 0
      %p128 = por %p126, %p127
      %p129 = scmp.ne.s32.totalorder %s115, %s116
      %p130 = scmp.eq.s32.totalorder %s26, 7
      %p131 = por %p129, %p130
      %p133 = scmp.ne.s32.totalorder %s116, %s132
      %p134 = scmp.eq.s32.totalorder %s26, 0
      %p135 = por %p133, %p134
      %s136 = ssub.s32 %s27, %s39
      %p137 = scmp.eq.s32.totalorder %s136, 0
      %s139 = sadd.s32 %s138, 1
      %s140 = scalar_select %p137, %s138, %s139
      %p143 = pneg %p137
      %p144 = scmp.eq.s32.totalorder %s20, 7
      %p145 = por %p143, %p144
      %p146 = scmp.ne.s32.totalorder %s138, %s141
      %p147 = scmp.eq.s32.totalorder %s20, 0
      %p148 = por %p146, %p147
      %p149 = scmp.ne.s32.totalorder %s138, %s141
      %p150 = scmp.eq.s32.totalorder %s25, 7
      %p151 = por %p149, %p150
      %p152 = scmp.ne.s32.totalorder %s141, %s142
      %p153 = scmp.eq.s32.totalorder %s25, 0
      %p154 = por %p152, %p153
      %p155 = scmp.ne.s32.totalorder %s141, %s142
      %p156 = scmp.eq.s32.totalorder %s26, 7
      %p157 = por %p155, %p156
      %p159 = scmp.ne.s32.totalorder %s142, %s158
      %p160 = scmp.eq.s32.totalorder %s26, 0
      %p161 = por %p159, %p160
      %s162 = ssub.s32 %s27, %s39
      %p163 = scmp.eq.s32.totalorder %s162, 0
      %s165 = sadd.s32 %s164, 1
      %s166 = scalar_select %p163, %s164, %s165
      %p169 = pneg %p163
      %p170 = scmp.eq.s32.totalorder %s20, 7
      %p171 = por %p169, %p170
      %p172 = scmp.ne.s32.totalorder %s164, %s167
      %p173 = scmp.eq.s32.totalorder %s20, 0
      %p174 = por %p172, %p173
      %p175 = scmp.ne.s32.totalorder %s164, %s167
      %p176 = scmp.eq.s32.totalorder %s25, 7
      %p177 = por %p175, %p176
      %p178 = scmp.ne.s32.totalorder %s167, %s168
      %p179 = scmp.eq.s32.totalorder %s25, 0
      %p180 = por %p178, %p179
      %p181 = scmp.ne.s32.totalorder %s167, %s168
      %p182 = scmp.eq.s32.totalorder %s26, 7
      %p183 = por %p181, %p182
      %p185 = scmp.ne.s32.totalorder %s168, %s184
      %p186 = scmp.eq.s32.totalorder %s26, 0
      %p187 = por %p185, %p186
      %p188 = scmp.le.s32.totalorder 1, %s20
      %p189 = scmp.lt.s32.totalorder %s20, 9
      %p190 = pnand %p188, %p189
      %p191 = pneg %p190
      // Predicated region
      $region9: #{tpu_custom_call.1} parent=5 // pred_check
        _
      $region10: #{tpu_custom_call.1} parent=5 // pred_check_branch
        %193 = sbr.rel (%p190) target = $region12
      $region11: #{tpu_custom_call.1} parent=5 // pred_region
        %s194 = ssub.s32 %s20, 1
        // Predicated region
        $region13: #{tpu_custom_call.1} parent=11 // pred_check
          %p195 = pneg %p79
        $region14: #{tpu_custom_call.1} parent=11 // pred_check_branch
          %197 = sbr.rel (%p195) target = $region16
        $region15: #{tpu_custom_call.1} parent=11 // pred_region
          _
        $region16: #{tpu_custom_call.1} parent=11 // pred_fallthru
          _
        // Predicated region
        $region17: #{tpu_custom_call.1} parent=11 // pred_check
          %p198 = pneg %p100
        $region18: #{tpu_custom_call.1} parent=11 // pred_check_branch
          %200 = sbr.rel (%p198) target = $region20
        $region19: #{tpu_custom_call.1} parent=11 // pred_region
          _
        $region20: #{tpu_custom_call.1} parent=11 // pred_fallthru
          _
      $region12: #{tpu_custom_call.1} parent=5 // pred_fallthru
        _
      %p201 = scmp.lt.s32.totalorder %s20, 8
      // Predicated region
      $region21: #{tpu_custom_call.1} parent=5 // pred_check
        %p202 = pneg %p201
      $region22: #{tpu_custom_call.1} parent=5 // pred_check_branch
        %204 = sbr.rel (%p202) target = $region24
      $region23: #{tpu_custom_call.1} parent=5 // pred_region
        // Predicated region
        $region25: #{tpu_custom_call.1} parent=23 // pred_check
          %p205 = pneg %p52
        $region26: #{tpu_custom_call.1} parent=23 // pred_check_branch
          %207 = sbr.rel (%p205) target = $region28
        $region27: #{tpu_custom_call.1} parent=23 // pred_region
          %s208 = sand.u32 %s42, 1
          %s209 = scalar_lea.sflag [#allocation4], %s208
          %s210 = sand.u32 %s42, 1
          %s211 = smul.addr %s210, 32
          %s212 = scalar_lea.vmem [#allocation3], %s211
          %s213 = smul.u32 4, %s28
          %s215 = ssub.s32 512, 512
          %216 = vsyncadd %s209, %s215
          %s217 = smul.addr %s213, 128
          %s218 = scalar_lea.hbm %s0, %s217
          %s219 = sshll.u32 %s212, 4
          %s220 = int_to_ptr.vmem [resolvable:$true] %s219
          %225 = dma.hbm_to_vmem [thread:$0]  %s218, 512, %s220, %s209, 128, 128, 8
        $region28: #{tpu_custom_call.1} parent=23 // pred_fallthru
          _
        // Predicated region
        $region29: #{tpu_custom_call.1} parent=23 // pred_check
          %p226 = pneg %p122
        $region30: #{tpu_custom_call.1} parent=23 // pred_check_branch
          %228 = sbr.rel (%p226) target = $region32
        $region31: #{tpu_custom_call.1} parent=23 // pred_region
          %s229 = sand.u32 %s112, 1
          %s230 = scalar_lea.sflag [#allocation7], %s229
          %s231 = sand.u32 %s112, 1
          %s232 = smul.addr %s231, 256
          %s233 = scalar_lea.vmem [#allocation6], %s232
          %s234 = smul.u32 4, %s28
          %s235 = smul.u32 2, %s27
          %s237 = ssub.s32 4096, 4096
          %238 = vsyncadd %s230, %s237
          %s239 = smul.addr %s234, 16
          %s240 = sadd.s32 %s235, %s239
          %s241 = smul.addr %s240, 128
          %s242 = scalar_lea.hbm %s3, %s241
          %s243 = sshll.u32 %s233, 4
          %s244 = int_to_ptr.vmem [resolvable:$true] %s243
          %249 = dma.hbm_to_vmem [thread:$0]  %s242, 4096, %s244, %s230, 512, 256, 16
        $region32: #{tpu_custom_call.1} parent=23 // pred_fallthru
          _
        // Predicated region
        $region33: #{tpu_custom_call.1} parent=23 // pred_check
          %p250 = pneg %p148
        $region34: #{tpu_custom_call.1} parent=23 // pred_check_branch
          %252 = sbr.rel (%p250) target = $region36
        $region35: #{tpu_custom_call.1} parent=23 // pred_region
          %s253 = smul.u32 2, %s27
          %p254 = scmp.lt.s32.totalorder %s253, 3
          %s255 = scalar_select %p254, %s253, 3
          %s256 = scalar_lea.vmem %s4, %s255
          %s257 = smul.u32 2, %s27
        $region36: #{tpu_custom_call.1} parent=23 // pred_fallthru
          _
      $region24: #{tpu_custom_call.1} parent=5 // pred_fallthru
        _
      %p258 = scmp.le.s32.totalorder 1, %s20
      %p259 = scmp.lt.s32.totalorder %s20, 9
      %p260 = pnand %p258, %p259
      %p261 = pneg %p260
      // Predicated region
      $region37: #{tpu_custom_call.1} parent=5 // pred_check
        _
      $region38: #{tpu_custom_call.1} parent=5 // pred_check_branch
        %263 = sbr.rel (%p260) target = $region40
      $region39: #{tpu_custom_call.1} parent=5 // pred_region
        %s264 = ssub.s32 %s20, 1
        %s265 = sand.u32 %s45, 1
        %s266 = scalar_lea.sflag [#allocation4], %s265
        %s267 = sand.u32 %s45, 1
        %s268 = smul.addr %s267, 32
        %s269 = scalar_lea.vmem [#allocation3], %s268
        // Predicated region
        $region41: #{tpu_custom_call.1} parent=39 // pred_check
          %p270 = pneg %p58
        $region42: #{tpu_custom_call.1} parent=39 // pred_check_branch
          %272 = sbr.rel (%p270) target = $region44
        $region43: #{tpu_custom_call.1} parent=39 // pred_region
          %273 = dma.done %s266, 512
        $region44: #{tpu_custom_call.1} parent=39 // pred_fallthru
          _
        %s274 = sand.u32 %s115, 1
        %s275 = scalar_lea.sflag [#allocation7], %s274
        %s276 = sand.u32 %s115, 1
        %s277 = smul.addr %s276, 256
        %s278 = scalar_lea.vmem [#allocation6], %s277
        // Predicated region
        $region45: #{tpu_custom_call.1} parent=39 // pred_check
          %p279 = pneg %p128
        $region46: #{tpu_custom_call.1} parent=39 // pred_check_branch
          %281 = sbr.rel (%p279) target = $region48
        $region47: #{tpu_custom_call.1} parent=39 // pred_region
          %282 = dma.done %s275, 4096
        $region48: #{tpu_custom_call.1} parent=39 // pred_fallthru
          _
        %s283 = sand.u32 %s45, 1
        %s284 = scalar_lea.sflag [#allocation4], %s283
        %s285 = sand.u32 %s45, 1
        %s286 = smul.addr %s285, 32
        %s287 = scalar_lea.vmem [#allocation3], %s286
        %p288 = pneg %p58
        %p289 = pneg %p55
        %p290 = pneg %p79
        %p291 = pneg %p76
        %p292 = pneg %p100
        %p293 = pneg %p97
        %s294 = sand.u32 %s115, 1
        %s295 = scalar_lea.sflag [#allocation7], %s294
        %s296 = sand.u32 %s115, 1
        %s297 = smul.addr %s296, 256
        %s298 = scalar_lea.vmem [#allocation6], %s297
        %p299 = pneg %p128
        %p300 = pneg %p125
        %s301 = smul.u32 2, %s29
        %p302 = scmp.lt.s32.totalorder %s301, 3
        %s303 = scalar_select %p302, %s301, 3
        %s304 = scalar_lea.vmem %s4, %s303
        %p305 = pneg %p154
        %p306 = pneg %p151
        %p307 = pneg %p180
        %p308 = pneg %p177
        %s309 = sand.u32 %s167, 1
        %s310 = scalar_lea.sflag [#allocation5], %s309
        %s311 = sand.u32 %s167, 1
        %s312 = smul.addr %s311, 16
        %s313 = scalar_lea.vmem [#allocation8], %s312
        %s314 = smul.u32 4, %s30
        %s315 = smul.u32 4, %s30
        %s316 = smul.u32 2, %s29
        %s317 = smul.u32 2, %s29
        %p318 = scmp.lt.s32.totalorder %s317, 3
        %s319 = scalar_select %p318, %s317, 3
        %s320 = scalar_lea.vmem %s4, %s319
        %s321 = smul.u32 2, %s29
        %s322 = smul.u32 2, %s29
        %p323 = scmp.eq.s32.totalorder %s30, 0
        // Predicated region
        $region49: #{tpu_custom_call.1} parent=39 // pred_check
          %p324 = pneg %p323
        $region50: #{tpu_custom_call.1} parent=39 // pred_check_branch
          %326 = sbr.rel (%p324) target = $region52
        $region51: #{tpu_custom_call.1} parent=39 // pred_region
          %327 = vst [vmem:[#allocation2] sm:$0xff] 0.0
          %328 = vst [vmem:[#allocation2 + $0x8] sm:$0xff] 0.0
        $region52: #{tpu_custom_call.1} parent=39 // pred_fallthru
          _
        %v329 = vld [vmem:[%s1] sm:$0x1]
        %v330 = vld [vmem:[%s2] sm:$0x1]
        %v331 = vld [vmem:[%s269] sm:$0xff]
        %vm332 = vcmask 261120
        %v333 = vsel %vm332, %v331, 0.0
        %334 = vadd.xlane.f32.xlu0 %v333
        %v335 = vpop.xlane.xlu0 %334
        %v336 = vrcp.pop 32.0
        %v337 = vmul.f32 %v335, %v336
        %v338 = vsub.f32 %v331, %v337
        %v339 = vmul.f32 %v338, %v338
        %v340 = vsel %vm332, %v339, 0.0
        %341 = vadd.xlane.f32.xlu0 %v340
        %v342 = vpop.xlane.xlu0 %341
        %v343 = vmul.f32 %v342, %v336
        %v344 = vadd.f32 %v343, 1e-05
        %v345 = vrsqrt.pop %v344
        %v346 = vmul.f32 %v338, %v345
        %v348 = vlaneseq
        %v349 = vshrl.u32 %v348, 7
        %v350 = vsub.s32 0, %v349
        %v351 = vrot.slane %v329, %v350
        %v353 = vmul.f32 %v346, %v351
        %v355 = vlaneseq
        %v356 = vshrl.u32 %v355, 7
        %v357 = vsub.s32 0, %v356
        %v358 = vrot.slane %v330, %v357
        %v360 = vadd.f32 %v353, %v358
        %v361 = vld [vmem:[#allocation2] sm:$0xff]
        %v362 = vld [vmem:[#allocation2 + $0x8] sm:$0xff]
        %v363 = vld [vmem:[%s278] sm:$0xff]
        %v364 = vld [vmem:[%s278 + $0x8] sm:$0xff]
        %v365 = vld [vmem:[%s278 + $0x10] sm:$0xff]
        %v366 = vld [vmem:[%s278 + $0x18] sm:$0xff]
        %v367 = vld [vmem:[%s278 + $0x20] sm:$0xff]
        %v368 = vld [vmem:[%s278 + $0x28] sm:$0xff]
        %v369 = vld [vmem:[%s278 + $0x30] sm:$0xff]
        %v370 = vld [vmem:[%s278 + $0x38] sm:$0xff]
        %v372 = vsel %vm332, %v360, 0
        %374 = vmatprep.subr.mxu0 0.0
        %375 = vmatpush1.msra.mxu0 0.0
        %376 = vmatprep.subr.mxu0 0.0
        %377 = vmatpush1.msra.mxu0 0.0
        %378 = vmatprep.subr.mxu0 0.0
        %379 = vmatpush1.msra.mxu0 0.0
        %380 = vmatprep.subr.mxu0 0.0
        %381 = vmatpush1.msra.mxu0 0.0
        %382 = vmatprep.subr.mxu0 0.0
        %383 = vmatpush1.msra.mxu0 0.0
        %384 = vmatprep.subr.mxu0 0.0
        %385 = vmatpush1.msra.mxu0 0.0
        %386 = vmatprep.subr.mxu0 0.0
        %387 = vmatpush1.msra.mxu0 0.0
        %388 = vmatprep.subr.mxu0 0.0
        %389 = vmatpush1.msra.mxu0 0.0
        %390 = vmatprep.subr.mxu0 0.0
        %391 = vmatpush1.msra.mxu0 0.0
        %392 = vmatprep.subr.mxu0 0.0
        %393 = vmatpush1.msra.mxu0 0.0
        %394 = vmatprep.subr.mxu0 0.0
        %395 = vmatpush1.msra.mxu0 0.0
        %396 = vmatprep.subr.mxu0 0.0
        %397 = vmatpush1.msra.mxu0 0.0
        %398 = vmatprep.subr.mxu0 %v370
        %399 = vmatpush1.msra.mxu0 %v369
        %400 = vmatprep.subr.mxu0 %v368
        %401 = vmatpush1.msra.mxu0 %v367
        %402 = vmatprep.subr.mxu0 %v366
        %403 = vmatpush1.msra.mxu0 %v365
        %404 = vmatprep.subr.mxu0 %v364
        %405 = vmatpush1.msra.mxu0 %v363
        %406 = vmatprep.subr.mxu0 0.0
        %407 = vmatpush2.msra.mxu0 0.0
        %408 = vmatprep.subr.mxu0 0.0
        %409 = vmatpush2.msra.mxu0 0.0
        %410 = vmatprep.subr.mxu0 0.0
        %411 = vmatpush2.msra.mxu0 0.0
        %412 = vmatprep.subr.mxu0 0.0
        %413 = vmatpush2.msra.mxu0 0.0
        %414 = vmatprep.subr.mxu0 0.0
        %415 = vmatpush2.msra.mxu0 0.0
        %416 = vmatprep.subr.mxu0 0.0
        %417 = vmatpush2.msra.mxu0 0.0
        %418 = vmatprep.subr.mxu0 0.0
        %419 = vmatpush2.msra.mxu0 0.0
        %420 = vmatprep.subr.mxu0 0.0
        %421 = vmatpush2.msra.mxu0 0.0
        %422 = vmatprep.subr.mxu0 0.0
        %423 = vmatpush2.msra.mxu0 0.0
        %424 = vmatprep.subr.mxu0 0.0
        %425 = vmatpush2.msra.mxu0 0.0
        %426 = vmatprep.subr.mxu0 0.0
        %427 = vmatpush2.msra.mxu0 0.0
        %428 = vmatprep.subr.mxu0 0.0
        %429 = vmatpush2.msra.mxu0 0.0
        %430 = vmatprep.subr.mxu0 0.0
        %431 = vmatpush2.msra.mxu0 0.0
        %432 = vmatprep.subr.mxu0 0.0
        %433 = vmatpush2.msra.mxu0 0.0
        %434 = vmatprep.subr.mxu0 0.0
        %435 = vmatpush2.msra.mxu0 0.0
        %436 = vmatprep.subr.mxu0 0.0
        %437 = vmatpush2.msra.mxu0 0.0
        %438 = vmatprep.mubr.f32.mxu0 0.0
        %439 = vmatmul.mubr.f32.gmra.mxu0 %v372
        %v440 = vpop.f32.mrf.mxu0
        %v441 = vadd.f32 0.0, %v440
        %v442 = vpop.f32.mrf.mxu0
        %v443 = vadd.f32 0.0, %v442
        %444 = vdwg.mxu0
        %v445 = vadd.f32 %v361, %v441
        %v446 = vadd.f32 %v362, %v443
        %447 = vst [vmem:[#allocation2] sm:$0xff] %v445
        %448 = vst [vmem:[#allocation2 + $0x8] sm:$0xff] %v446
        %s449 = scalar_lea.vmem %s269, 8 [#allocation3]
        %v450 = vld [vmem:[%s449] sm:$0xff]
        %v451 = vsel %vm332, %v450, 0.0
        %452 = vadd.xlane.f32.xlu0 %v451
        %v453 = vpop.xlane.xlu0 %452
        %v454 = vmul.f32 %v453, %v336
        %v455 = vsub.f32 %v450, %v454
        %v456 = vmul.f32 %v455, %v455
        %v457 = vsel %vm332, %v456, 0.0
        %458 = vadd.xlane.f32.xlu0 %v457
        %v459 = vpop.xlane.xlu0 %458
        %v460 = vmul.f32 %v459, %v336
        %v461 = vadd.f32 %v460, 1e-05
        %v462 = vrsqrt.pop %v461
        %v463 = vmul.f32 %v455, %v462
        %v464 = vmul.f32 %v463, %v351
        %v465 = vadd.f32 %v464, %v358
        %v466 = vld [vmem:[#allocation2] sm:$0xff]
        %v467 = vld [vmem:[#allocation2 + $0x8] sm:$0xff]
        %s468 = scalar_lea.vmem %s278, 64 [#allocation6]
        %v469 = vld [vmem:[%s468] sm:$0xff]
        %v470 = vld [vmem:[%s468 + $0x8] sm:$0xff]
        %v471 = vld [vmem:[%s468 + $0x10] sm:$0xff]
        %v472 = vld [vmem:[%s468 + $0x18] sm:$0xff]
        %v473 = vld [vmem:[%s468 + $0x20] sm:$0xff]
        %v474 = vld [vmem:[%s468 + $0x28] sm:$0xff]
        %v475 = vld [vmem:[%s468 + $0x30] sm:$0xff]
        %v476 = vld [vmem:[%s468 + $0x38] sm:$0xff]
        %v478 = vsel %vm332, %v465, 0
        %480 = vmatprep.subr.mxu0 0.0
        %481 = vmatpush1.msra.mxu0 0.0
        %482 = vmatprep.subr.mxu0 0.0
        %483 = vmatpush1.msra.mxu0 0.0
        %484 = vmatprep.subr.mxu0 0.0
        %485 = vmatpush1.msra.mxu0 0.0
        %486 = vmatprep.subr.mxu0 0.0
        %487 = vmatpush1.msra.mxu0 0.0
        %488 = vmatprep.subr.mxu0 0.0
        %489 = vmatpush1.msra.mxu0 0.0
        %490 = vmatprep.subr.mxu0 0.0
        %491 = vmatpush1.msra.mxu0 0.0
        %492 = vmatprep.subr.mxu0 0.0
        %493 = vmatpush1.msra.mxu0 0.0
        %494 = vmatprep.subr.mxu0 0.0
        %495 = vmatpush1.msra.mxu0 0.0
        %496 = vmatprep.subr.mxu0 0.0
        %497 = vmatpush1.msra.mxu0 0.0
        %498 = vmatprep.subr.mxu0 0.0
        %499 = vmatpush1.msra.mxu0 0.0
        %500 = vmatprep.subr.mxu0 0.0
        %501 = vmatpush1.msra.mxu0 0.0
        %502 = vmatprep.subr.mxu0 0.0
        %503 = vmatpush1.msra.mxu0 0.0
        %504 = vmatprep.subr.mxu0 %v476
        %505 = vmatpush1.msra.mxu0 %v475
        %506 = vmatprep.subr.mxu0 %v474
        %507 = vmatpush1.msra.mxu0 %v473
        %508 = vmatprep.subr.mxu0 %v472
        %509 = vmatpush1.msra.mxu0 %v471
        %510 = vmatprep.subr.mxu0 %v470
        %511 = vmatpush1.msra.mxu0 %v469
        %512 = vmatprep.subr.mxu0 0.0
        %513 = vmatpush2.msra.mxu0 0.0
        %514 = vmatprep.subr.mxu0 0.0
        %515 = vmatpush2.msra.mxu0 0.0
        %516 = vmatprep.subr.mxu0 0.0
        %517 = vmatpush2.msra.mxu0 0.0
        %518 = vmatprep.subr.mxu0 0.0
        %519 = vmatpush2.msra.mxu0 0.0
        %520 = vmatprep.subr.mxu0 0.0
        %521 = vmatpush2.msra.mxu0 0.0
        %522 = vmatprep.subr.mxu0 0.0
        %523 = vmatpush2.msra.mxu0 0.0
        %524 = vmatprep.subr.mxu0 0.0
        %525 = vmatpush2.msra.mxu0 0.0
        %526 = vmatprep.subr.mxu0 0.0
        %527 = vmatpush2.msra.mxu0 0.0
        %528 = vmatprep.subr.mxu0 0.0
        %529 = vmatpush2.msra.mxu0 0.0
        %530 = vmatprep.subr.mxu0 0.0
        %531 = vmatpush2.msra.mxu0 0.0
        %532 = vmatprep.subr.mxu0 0.0
        %533 = vmatpush2.msra.mxu0 0.0
        %534 = vmatprep.subr.mxu0 0.0
        %535 = vmatpush2.msra.mxu0 0.0
        %536 = vmatprep.subr.mxu0 0.0
        %537 = vmatpush2.msra.mxu0 0.0
        %538 = vmatprep.subr.mxu0 0.0
        %539 = vmatpush2.msra.mxu0 0.0
        %540 = vmatprep.subr.mxu0 0.0
        %541 = vmatpush2.msra.mxu0 0.0
        %542 = vmatprep.subr.mxu0 0.0
        %543 = vmatpush2.msra.mxu0 0.0
        %544 = vmatprep.mubr.f32.mxu0 0.0
        %545 = vmatmul.mubr.f32.gmra.mxu0 %v478
        %v546 = vpop.f32.mrf.mxu0
        %v547 = vadd.f32 0.0, %v546
        %v548 = vpop.f32.mrf.mxu0
        %v549 = vadd.f32 0.0, %v548
        %550 = vdwg.mxu0
        %v551 = vadd.f32 %v466, %v547
        %v552 = vadd.f32 %v467, %v549
        %553 = vst [vmem:[#allocation2] sm:$0xff] %v551
        %554 = vst [vmem:[#allocation2 + $0x8] sm:$0xff] %v552
        %s555 = scalar_lea.vmem %s269, 16 [#allocation3]
        %v556 = vld [vmem:[%s555] sm:$0xff]
        %v557 = vsel %vm332, %v556, 0.0
        %558 = vadd.xlane.f32.xlu0 %v557
        %v559 = vpop.xlane.xlu0 %558
        %v560 = vmul.f32 %v559, %v336
        %v561 = vsub.f32 %v556, %v560
        %v562 = vmul.f32 %v561, %v561
        %v563 = vsel %vm332, %v562, 0.0
        %564 = vadd.xlane.f32.xlu0 %v563
        %v565 = vpop.xlane.xlu0 %564
        %v566 = vmul.f32 %v565, %v336
        %v567 = vadd.f32 %v566, 1e-05
        %v568 = vrsqrt.pop %v567
        %v569 = vmul.f32 %v561, %v568
        %v570 = vmul.f32 %v569, %v351
        %v571 = vadd.f32 %v570, %v358
        %v572 = vld [vmem:[#allocation2] sm:$0xff]
        %v573 = vld [vmem:[#allocation2 + $0x8] sm:$0xff]
        %s574 = scalar_lea.vmem %s278, 128 [#allocation6]
        %v575 = vld [vmem:[%s574] sm:$0xff]
        %v576 = vld [vmem:[%s574 + $0x8] sm:$0xff]
        %v577 = vld [vmem:[%s574 + $0x10] sm:$0xff]
        %v578 = vld [vmem:[%s574 + $0x18] sm:$0xff]
        %v579 = vld [vmem:[%s574 + $0x20] sm:$0xff]
        %v580 = vld [vmem:[%s574 + $0x28] sm:$0xff]
        %v581 = vld [vmem:[%s574 + $0x30] sm:$0xff]
        %v582 = vld [vmem:[%s574 + $0x38] sm:$0xff]
        %v584 = vsel %vm332, %v571, 0
        %586 = vmatprep.subr.mxu0 0.0
        %587 = vmatpush1.msra.mxu0 0.0
        %588 = vmatprep.subr.mxu0 0.0
        %589 = vmatpush1.msra.mxu0 0.0
        %590 = vmatprep.subr.mxu0 0.0
        %591 = vmatpush1.msra.mxu0 0.0
        %592 = vmatprep.subr.mxu0 0.0
        %593 = vmatpush1.msra.mxu0 0.0
        %594 = vmatprep.subr.mxu0 0.0
        %595 = vmatpush1.msra.mxu0 0.0
        %596 = vmatprep.subr.mxu0 0.0
        %597 = vmatpush1.msra.mxu0 0.0
        %598 = vmatprep.subr.mxu0 0.0
        %599 = vmatpush1.msra.mxu0 0.0
        %600 = vmatprep.subr.mxu0 0.0
        %601 = vmatpush1.msra.mxu0 0.0
        %602 = vmatprep.subr.mxu0 0.0
        %603 = vmatpush1.msra.mxu0 0.0
        %604 = vmatprep.subr.mxu0 0.0
        %605 = vmatpush1.msra.mxu0 0.0
        %606 = vmatprep.subr.mxu0 0.0
        %607 = vmatpush1.msra.mxu0 0.0
        %608 = vmatprep.subr.mxu0 0.0
        %609 = vmatpush1.msra.mxu0 0.0
        %610 = vmatprep.subr.mxu0 %v582
        %611 = vmatpush1.msra.mxu0 %v581
        %612 = vmatprep.subr.mxu0 %v580
        %613 = vmatpush1.msra.mxu0 %v579
        %614 = vmatprep.subr.mxu0 %v578
        %615 = vmatpush1.msra.mxu0 %v577
        %616 = vmatprep.subr.mxu0 %v576
        %617 = vmatpush1.msra.mxu0 %v575
        %618 = vmatprep.subr.mxu0 0.0
        %619 = vmatpush2.msra.mxu0 0.0
        %620 = vmatprep.subr.mxu0 0.0
        %621 = vmatpush2.msra.mxu0 0.0
        %622 = vmatprep.subr.mxu0 0.0
        %623 = vmatpush2.msra.mxu0 0.0
        %624 = vmatprep.subr.mxu0 0.0
        %625 = vmatpush2.msra.mxu0 0.0
        %626 = vmatprep.subr.mxu0 0.0
        %627 = vmatpush2.msra.mxu0 0.0
        %628 = vmatprep.subr.mxu0 0.0
        %629 = vmatpush2.msra.mxu0 0.0
        %630 = vmatprep.subr.mxu0 0.0
        %631 = vmatpush2.msra.mxu0 0.0
        %632 = vmatprep.subr.mxu0 0.0
        %633 = vmatpush2.msra.mxu0 0.0
        %634 = vmatprep.subr.mxu0 0.0
        %635 = vmatpush2.msra.mxu0 0.0
        %636 = vmatprep.subr.mxu0 0.0
        %637 = vmatpush2.msra.mxu0 0.0
        %638 = vmatprep.subr.mxu0 0.0
        %639 = vmatpush2.msra.mxu0 0.0
        %640 = vmatprep.subr.mxu0 0.0
        %641 = vmatpush2.msra.mxu0 0.0
        %642 = vmatprep.subr.mxu0 0.0
        %643 = vmatpush2.msra.mxu0 0.0
        %644 = vmatprep.subr.mxu0 0.0
        %645 = vmatpush2.msra.mxu0 0.0
        %646 = vmatprep.subr.mxu0 0.0
        %647 = vmatpush2.msra.mxu0 0.0
        %648 = vmatprep.subr.mxu0 0.0
        %649 = vmatpush2.msra.mxu0 0.0
        %650 = vmatprep.mubr.f32.mxu0 0.0
        %651 = vmatmul.mubr.f32.gmra.mxu0 %v584
        %v652 = vpop.f32.mrf.mxu0
        %v653 = vadd.f32 0.0, %v652
        %v654 = vpop.f32.mrf.mxu0
        %v655 = vadd.f32 0.0, %v654
        %656 = vdwg.mxu0
        %v657 = vadd.f32 %v572, %v653
        %v658 = vadd.f32 %v573, %v655
        %659 = vst [vmem:[#allocation2] sm:$0xff] %v657
        %660 = vst [vmem:[#allocation2 + $0x8] sm:$0xff] %v658
        %s661 = scalar_lea.vmem %s269, 24 [#allocation3]
        %v662 = vld [vmem:[%s661] sm:$0xff]
        %v663 = vsel %vm332, %v662, 0.0
        %664 = vadd.xlane.f32.xlu0 %v663
        %v665 = vpop.xlane.xlu0 %664
        %v666 = vmul.f32 %v665, %v336
        %v667 = vsub.f32 %v662, %v666
        %v668 = vmul.f32 %v667, %v667
        %v669 = vsel %vm332, %v668, 0.0
        %670 = vadd.xlane.f32.xlu0 %v669
        %v671 = vpop.xlane.xlu0 %670
        %v672 = vmul.f32 %v671, %v336
        %v673 = vadd.f32 %v672, 1e-05
        %v674 = vrsqrt.pop %v673
        %v675 = vmul.f32 %v667, %v674
        %v676 = vmul.f32 %v675, %v351
        %v677 = vadd.f32 %v676, %v358
        %v678 = vld [vmem:[#allocation2] sm:$0xff]
        %v679 = vld [vmem:[#allocation2 + $0x8] sm:$0xff]
        %s680 = scalar_lea.vmem %s278, 192 [#allocation6]
        %v681 = vld [vmem:[%s680] sm:$0xff]
        %v682 = vld [vmem:[%s680 + $0x8] sm:$0xff]
        %v683 = vld [vmem:[%s680 + $0x10] sm:$0xff]
        %v684 = vld [vmem:[%s680 + $0x18] sm:$0xff]
        %v685 = vld [vmem:[%s680 + $0x20] sm:$0xff]
        %v686 = vld [vmem:[%s680 + $0x28] sm:$0xff]
        %v687 = vld [vmem:[%s680 + $0x30] sm:$0xff]
        %v688 = vld [vmem:[%s680 + $0x38] sm:$0xff]
        %v690 = vsel %vm332, %v677, 0
        %692 = vmatprep.subr.mxu0 0.0
        %693 = vmatpush1.msra.mxu0 0.0
        %694 = vmatprep.subr.mxu0 0.0
        %695 = vmatpush1.msra.mxu0 0.0
        %696 = vmatprep.subr.mxu0 0.0
        %697 = vmatpush1.msra.mxu0 0.0
        %698 = vmatprep.subr.mxu0 0.0
        %699 = vmatpush1.msra.mxu0 0.0
        %700 = vmatprep.subr.mxu0 0.0
        %701 = vmatpush1.msra.mxu0 0.0
        %702 = vmatprep.subr.mxu0 0.0
        %703 = vmatpush1.msra.mxu0 0.0
        %704 = vmatprep.subr.mxu0 0.0
        %705 = vmatpush1.msra.mxu0 0.0
        %706 = vmatprep.subr.mxu0 0.0
        %707 = vmatpush1.msra.mxu0 0.0
        %708 = vmatprep.subr.mxu0 0.0
        %709 = vmatpush1.msra.mxu0 0.0
        %710 = vmatprep.subr.mxu0 0.0
        %711 = vmatpush1.msra.mxu0 0.0
        %712 = vmatprep.subr.mxu0 0.0
        %713 = vmatpush1.msra.mxu0 0.0
        %714 = vmatprep.subr.mxu0 0.0
        %715 = vmatpush1.msra.mxu0 0.0
        %716 = vmatprep.subr.mxu0 %v688
        %717 = vmatpush1.msra.mxu0 %v687
        %718 = vmatprep.subr.mxu0 %v686
        %719 = vmatpush1.msra.mxu0 %v685
        %720 = vmatprep.subr.mxu0 %v684
        %721 = vmatpush1.msra.mxu0 %v683
        %722 = vmatprep.subr.mxu0 %v682
        %723 = vmatpush1.msra.mxu0 %v681
        %724 = vmatprep.subr.mxu0 0.0
        %725 = vmatpush2.msra.mxu0 0.0
        %726 = vmatprep.subr.mxu0 0.0
        %727 = vmatpush2.msra.mxu0 0.0
        %728 = vmatprep.subr.mxu0 0.0
        %729 = vmatpush2.msra.mxu0 0.0
        %730 = vmatprep.subr.mxu0 0.0
        %731 = vmatpush2.msra.mxu0 0.0
        %732 = vmatprep.subr.mxu0 0.0
        %733 = vmatpush2.msra.mxu0 0.0
        %734 = vmatprep.subr.mxu0 0.0
        %735 = vmatpush2.msra.mxu0 0.0
        %736 = vmatprep.subr.mxu0 0.0
        %737 = vmatpush2.msra.mxu0 0.0
        %738 = vmatprep.subr.mxu0 0.0
        %739 = vmatpush2.msra.mxu0 0.0
        %740 = vmatprep.subr.mxu0 0.0
        %741 = vmatpush2.msra.mxu0 0.0
        %742 = vmatprep.subr.mxu0 0.0
        %743 = vmatpush2.msra.mxu0 0.0
        %744 = vmatprep.subr.mxu0 0.0
        %745 = vmatpush2.msra.mxu0 0.0
        %746 = vmatprep.subr.mxu0 0.0
        %747 = vmatpush2.msra.mxu0 0.0
        %748 = vmatprep.subr.mxu0 0.0
        %749 = vmatpush2.msra.mxu0 0.0
        %750 = vmatprep.subr.mxu0 0.0
        %751 = vmatpush2.msra.mxu0 0.0
        %752 = vmatprep.subr.mxu0 0.0
        %753 = vmatpush2.msra.mxu0 0.0
        %754 = vmatprep.subr.mxu0 0.0
        %755 = vmatpush2.msra.mxu0 0.0
        %756 = vmatprep.mubr.f32.mxu0 0.0
        %757 = vmatmul.mubr.f32.gmra.mxu0 %v690
        %v758 = vpop.f32.mrf.mxu0
        %v759 = vadd.f32 0.0, %v758
        %v760 = vpop.f32.mrf.mxu0
        %v761 = vadd.f32 0.0, %v760
        %762 = vdwg.mxu0
        %v763 = vadd.f32 %v678, %v759
        %v764 = vadd.f32 %v679, %v761
        %765 = vst [vmem:[#allocation2] sm:$0xff] %v763
        %766 = vst [vmem:[#allocation2 + $0x8] sm:$0xff] %v764
        %p767 = scmp.eq.s32.totalorder %s30, 3
        // Predicated region
        $region53: #{tpu_custom_call.1} parent=39 // pred_check
          %p768 = pneg %p767
        $region54: #{tpu_custom_call.1} parent=39 // pred_check_branch
          %770 = sbr.rel (%p768) target = $region56
        $region55: #{tpu_custom_call.1} parent=39 // pred_region
          %v771 = vld [vmem:[#allocation2] sm:$0xff]
          %v772 = vld [vmem:[#allocation2 + $0x8] sm:$0xff]
          %v773 = vld [vmem:[%s320] sm:$0x3]
          %v775 = vlaneseq
          %v776 = vshrl.u32 %v775, 7
          %v777 = vsub.s32 0, %v776
          %v778 = vrot.slane %v773, %v777
          %v779 = vlaneseq
          %v780 = vshrl.u32 %v779, 7
          %v781 = vsub.s32 1, %v780
          %v782 = vrot.slane %v773, %v781
          %v785 = vadd.f32 %v771, %v778
          %v786 = vadd.f32 %v772, %v782
          %v787 = vmax.f32 %v785, 0.0
          %v788 = vmax.f32 %v786, 0.0
          %789 = vst [vmem:[%s313] sm:$0xff] %v787
          %790 = vst [vmem:[%s313 + $0x8] sm:$0xff] %v788
        $region56: #{tpu_custom_call.1} parent=39 // pred_fallthru
          _
        %s791 = sand.u32 %s167, 1
        %s792 = scalar_lea.sflag [#allocation5], %s791
        %s793 = sand.u32 %s167, 1
        %s794 = smul.addr %s793, 16
        %s795 = scalar_lea.vmem [#allocation8], %s794
        // Predicated region
        $region57: #{tpu_custom_call.1} parent=39 // pred_check
          %p796 = pneg %p177
        $region58: #{tpu_custom_call.1} parent=39 // pred_check_branch
          %798 = sbr.rel (%p796) target = $region60
        $region59: #{tpu_custom_call.1} parent=39 // pred_region
          %s799 = smul.u32 2, %s29
          %s801 = ssub.s32 256, 256
          %802 = vsyncadd %s792, %s801
          %s803 = smul.addr %s799, 128
          %s804 = scalar_lea.hbm %s5, %s803
          %s806 = sshll.u32 %s795, 4
          %s807 = int_to_ptr.vmem [resolvable:$true] %s806
          %809 = dma.vmem_to_hbm [thread:$0]  %s807, 256, %s804, %s792
        $region60: #{tpu_custom_call.1} parent=39 // pred_fallthru
          _
      $region40: #{tpu_custom_call.1} parent=5 // pred_fallthru
        _
      %p810 = scmp.le.s32.totalorder 2, %s20
      // Predicated region
      $region61: #{tpu_custom_call.1} parent=5 // pred_check
        %p811 = pneg %p810
      $region62: #{tpu_custom_call.1} parent=5 // pred_check_branch
        %813 = sbr.rel (%p811) target = $region64
      $region63: #{tpu_custom_call.1} parent=5 // pred_region
        %s814 = ssub.s32 %s20, 2
        // Predicated region
        $region65: #{tpu_custom_call.1} parent=63 // pred_check
          %p815 = pneg %p183
        $region66: #{tpu_custom_call.1} parent=63 // pred_check_branch
          %817 = sbr.rel (%p815) target = $region68
        $region67: #{tpu_custom_call.1} parent=63 // pred_region
          %s818 = sand.u32 %s168, 1
          %s819 = scalar_lea.sflag [#allocation5], %s818
          %s820 = sand.u32 %s168, 1
          %s821 = smul.addr %s820, 16
          %s822 = scalar_lea.vmem [#allocation8], %s821
          %823 = dma.done %s819, 256
        $region68: #{tpu_custom_call.1} parent=63 // pred_fallthru
          _
      $region64: #{tpu_custom_call.1} parent=5 // pred_fallthru
        _
    $region6: #{tpu_custom_call.1} parent=1 // loop_footer
      %s24 = sadd.s32 1, %s20
    $region7: #{tpu_custom_call.1} parent=1 // loop_footer_branch
      %19 = sbr.rel target = $region3
    $region8: #{tpu_custom_call.1} parent=1 // loop_exit
      _
    %824 = vsyncpa [#allocation4], 1
    %s825 = scalar_lea.sflag [#allocation4], 1
    %826 = vsyncpa %s825, 1
    %827 = vsyncpa [#allocation7], 1
    %s828 = scalar_lea.sflag [#allocation7], 1
    %829 = vsyncpa %s828, 1
    %830 = vsyncpa [#allocation5], 1
    %s831 = scalar_lea.sflag [#allocation5], 1
    %832 = vsyncpa %s831, 1

</llo_original>
